<compile_context>
chip_gen: v7x
topology: tpu7x:2x2x1
jax: 0.10.0
libtpu: 0.0.40
codegen_flags: <defaults>
</compile_context>

<pallas_src>
import jax
import jax.numpy as jnp
import numpy as np
from jax.experimental import pallas as pl
from jax.experimental.pallas import tpu as pltpu

_LANES = 128
_TARGET_IN_BYTES = 2 << 20  # ~2 MiB of input per block (=> 4 MiB f32 output block)


def _tofp32_kernel(x_ref, o_ref):
    # Elementwise dtype cast on the VPU (free filler; kernel is DMA-bound).
    o_ref[...] = x_ref[...].astype(jnp.float32)


def _cast2d(x2d):
    """Cast a (rows, width) array to float32 with a tiled Pallas kernel."""
    rows, width = x2d.shape
    itemsize = x2d.dtype.itemsize

    # Pick the row-tile so one input block is ~2 MiB; keep it a multiple of 8
    # (or the full row extent) for (8, 128) alignment. Partial last blocks are
    # handled by Pallas (masked writeback), which is safe for elementwise ops.
    target_rows = max(1, _TARGET_IN_BYTES // (width * itemsize))
    if target_rows >= rows:
        tile_rows = rows
    else:
        tile_rows = max(8, (target_rows // 8) * 8)
    grid = (pl.cdiv(rows, tile_rows),)

    # Double-buffered VMEM footprint: 2 * (in_block + out_block) + headroom.
    block_bytes = tile_rows * width * (itemsize + 4)
    vmem_limit = int(min(60 << 20, max(32 << 20, 2 * block_bytes + (4 << 20))))

    return pl.pallas_call(
        _tofp32_kernel,
        out_shape=jax.ShapeDtypeStruct((rows, width), jnp.float32),
        grid_spec=pltpu.PrefetchScalarGridSpec(
            num_scalar_prefetch=0,
            grid=grid,
            in_specs=[pl.BlockSpec((tile_rows, width), lambda i: (i, 0))],
            out_specs=pl.BlockSpec((tile_rows, width), lambda i: (i, 0)),
        ),
        compiler_params=pltpu.CompilerParams(
            dimension_semantics=("parallel",),
            vmem_limit_bytes=vmem_limit,
        ),
        cost_estimate=pl.CostEstimate(
            flops=0,
            transcendentals=0,
            bytes_accessed=rows * width * (itemsize + 4),
        ),
    )(x2d)


def tofp32(x):
    """Equivalent of PyTorch `input.float()` via a Pallas TPU kernel."""
    x = jnp.asarray(x)

    # Fast path: cast is a no-op.
    if x.dtype == jnp.float32:
        return x

    n = x.size
    if n == 0:
        return x.astype(jnp.float32)

    flat = x.reshape(-1)

    if n % _LANES == 0:
        # Widest lane dimension (multiple of 128, capped at 2048) that divides n.
        width = _LANES
        for cand in (2048, 1024, 512, 256):
            if n % cand == 0:
                width = cand
                break
        out2d = _cast2d(flat.reshape(n // width, width))
        return out2d.reshape(x.shape)

    # Ragged case: kernel over the 128-aligned main part, plain cast on the
    # small tail (avoids padding/slicing the whole tensor through HBM).
    main_n = (n // _LANES) * _LANES
    if main_n == 0:
        # Tiny input: not worth a kernel launch.
        return x.astype(jnp.float32)
    main = _cast2d(flat[:main_n].reshape(main_n // _LANES, _LANES)).reshape(-1)
    tail = flat[main_n:].astype(jnp.float32)
    return jnp.concatenate([main, tail]).reshape(x.shape)


if __name__ == "__main__":
    key = jax.random.PRNGKey(0)

    # NCHW bf16 input, matching the module's typical use.
    x = jax.random.normal(key, (2, 4, 16, 16), dtype=jnp.float32).astype(jnp.bfloat16)
    y = tofp32(x)
    jax.block_until_ready(y)
    ref = x.astype(jnp.float32)
    assert y.dtype == jnp.float32
    assert y.shape == x.shape
    assert bool(jnp.array_equal(y, ref))

    # 128-aligned but odd row count exercises the narrow-width path.
    x2 = jax.random.normal(key, (2, 4, 16, 17), dtype=jnp.float32).astype(jnp.bfloat16)
    y2 = tofp32(x2)
    jax.block_until_ready(y2)
    assert bool(jnp.array_equal(y2, x2.astype(jnp.float32)))

    # Already-f32 fast path (no kernel launch).
    x3 = jax.random.normal(key, (2, 4, 16, 16), dtype=jnp.float32)
    y3 = tofp32(x3)
    assert y3.dtype == jnp.float32
    assert bool(jnp.array_equal(y3, x3))

    print("KERNEL_OK")
</pallas_src>

<mosaic_0001>
module attributes {stable_mosaic.version = 11 : i64} {
  func.func @_tofp32_kernel(%arg0: i32, %arg1: memref<1x2048xbf16, #tpu.memory_space<vmem>>, %arg2: memref<1x2048xf32, #tpu.memory_space<vmem>>) attributes {dimension_semantics = [#tpu.dimension_semantics<parallel>], iteration_bounds = array<i64: 1>, scalar_prefetch = 0 : i64, scratch_operands = 0 : i64, tpu.core_type = #tpu.core_type<tc>, window_params = [{transform_indices = @transform_0, window_bounds = array<i64: 1, 2048>}, {transform_indices = @transform_1, window_bounds = array<i64: 1, 2048>}]} {
    %c0 = arith.constant 0 : index
    %c0_0 = arith.constant 0 : index
    %0 = vector.load %arg1[%c0, %c0_0] : memref<1x2048xbf16, #tpu.memory_space<vmem>>, vector<1x2048xbf16>
    %1 = arith.extf %0 : vector<1x2048xbf16> to vector<1x2048xf32>
    %c0_1 = arith.constant 0 : index
    %c0_2 = arith.constant 0 : index
    %2 = vector.load %arg2[%c0_1, %c0_2] : memref<1x2048xf32, #tpu.memory_space<vmem>>, vector<1x2048xf32>
    tpu.vector_store %arg2[%c0_1, %c0_2], %1 {strides = array<i32>} : memref<1x2048xf32, #tpu.memory_space<vmem>>, vector<1x2048xf32>,
    return
  }
  func.func @transform_0(%arg0: i32) -> (i32, i32) {
    %c0_i32 = arith.constant 0 : i32
    %c0_i32_0 = arith.constant 0 : i32
    return %arg0, %c0_i32 : i32, i32
  }
  func.func @transform_1(%arg0: i32) -> (i32, i32) {
    %c0_i32 = arith.constant 0 : i32
    %c0_i32_0 = arith.constant 0 : i32
    return %arg0, %c0_i32 : i32, i32
  }
}

</mosaic_0001>

<llo_original>
// kernel: tpu_custom_call.1
$region0: #{tpu_custom_call.1}
  #allocation0 [shape = 'u32[]', space=smem, size = 0x4, offset = 0x4, fixed_abs, tag = 'smem constant byte address 0x4 - core index']
  #allocation1 [shape = 'u32[144,128]{1,0:T(1,128)}', space=vmem, size = 0x12000, scoped, tag = 'internal scratch']
  %s0 = inlined_call_operand.hbm [shape: bf16[1,2048], index: 0, kind: input, shape index: {}]
  %s1 = inlined_call_operand.hbm [shape: f32[1,2048], index: 1, kind: output, shape index: {}]
  %s2 = sld [smem:[#allocation0]]
  $region18: #{tpu_custom_call.1} parent=0
    _
  %s4 = ssub.s32 1, %s2
  %s5 = scalar_select 0, %s4, %s2
  $region1: #{tpu_custom_call.1} parent=0
    #allocation2 [shape = 'u8[8192]{0}', space=vmem, size = 0x2000, scoped, tag = 'input window, operand 0, single buffered']
    #allocation3 [shape = 's32[1]{0}', space=sflag, size = 0x4, scoped, tag = 'scoped memory for tpu_custom_call.1']
    #allocation4 [shape = 's32[1]{0}', space=sflag, size = 0x4, scoped, tag = 'scoped memory for tpu_custom_call.1']
    #allocation5 [shape = 'u8[8192]{0}', space=vmem, size = 0x2000, scoped, tag = 'output window, operand 0, single buffered']
    %6 = vsyncpa [#allocation3], 0
    %7 = vsyncpa [#allocation4], 0
    // Predicated region
    $region2: #{tpu_custom_call.1} parent=1 // pred_check
      _
    $region3: #{tpu_custom_call.1} parent=1 // pred_check_branch
      %9 = sbr.rel (0) target = $region5
    $region4: #{tpu_custom_call.1} parent=1 // pred_region
      %s11 = ssub.s32 256, 256
      %12 = vsyncadd [#allocation3], %s11
      %s14 = sshll.u32 [#allocation2], 4
      %s15 = int_to_ptr.vmem [resolvable:$true] %s14
      %17 = dma.hbm_to_vmem [thread:$0]  %s0, 256, %s15, [#allocation3]
    $region5: #{tpu_custom_call.1} parent=1 // pred_fallthru
      _
    // Predicated region
    $region6: #{tpu_custom_call.1} parent=1 // pred_check
      _
    $region7: #{tpu_custom_call.1} parent=1 // pred_check_branch
      %19 = sbr.rel (0) target = $region9
    $region8: #{tpu_custom_call.1} parent=1 // pred_region
      %20 = dma.done [#allocation3], 256
    $region9: #{tpu_custom_call.1} parent=1 // pred_fallthru
      _
    %v21 = vld [vmem:[#allocation2] sm:$0xff]
    %v22 = vld [vmem:[#allocation2 + $0x8] sm:$0xff]
    %v23 = vunpack.c.l.bf16 %v21
    %v24 = vunpack.c.h.bf16 %v21
    %v25 = vunpack.c.l.bf16 %v22
    %v26 = vunpack.c.h.bf16 %v22
    %v32 = vunpack.c.l.s4 1966171168
    %v33 = vunpack.c.0.s8 %v32
    %v34 = vlaneseq
    %v35 = vshrl.u32 %v34, 7
    %v36 = vsub.s32 %v33, %v35
    %v37 = vrot.slane %v23, %v36
    %v39 = vunpack.c.l.s4 1966171168
    %v40 = vunpack.c.0.s8 %v39
    %v41 = vlaneseq
    %v42 = vshrl.u32 %v41, 7
    %v43 = vsub.s32 %v40, %v42
    %v44 = vrot.slane %v24, %v43
    %v45 = vcombine.low %v37, %v44
    %v47 = vunpack.c.l.s4 1966171168
    %v48 = vunpack.c.0.s8 %v47
    %v49 = vlaneseq
    %v50 = vshrl.u32 %v49, 7
    %v51 = vsub.s32 %v48, %v50
    %v52 = vrot.slane %v25, %v51
    %v54 = vunpack.c.l.s4 1966171168
    %v55 = vunpack.c.0.s8 %v54
    %v56 = vlaneseq
    %v57 = vshrl.u32 %v56, 7
    %v58 = vsub.s32 %v55, %v57
    %v59 = vrot.slane %v26, %v58
    %v60 = vcombine.low %v52, %v59
    %63 = vst [vmem:[#allocation5] sm:$0xff] %v45
    %64 = vst [vmem:[#allocation5 + $0x8] sm:$0xff] %v60
    // Predicated region
    $region10: #{tpu_custom_call.1} parent=1 // pred_check
      _
    $region11: #{tpu_custom_call.1} parent=1 // pred_check_branch
      %66 = sbr.rel (0) target = $region13
    $region12: #{tpu_custom_call.1} parent=1 // pred_region
      %s68 = ssub.s32 256, 256
      %69 = vsyncadd [#allocation4], %s68
      %s71 = sshll.u32 [#allocation5], 4
      %s72 = int_to_ptr.vmem [resolvable:$true] %s71
      %74 = dma.vmem_to_hbm [thread:$0]  %s72, 256, %s1, [#allocation4]
    $region13: #{tpu_custom_call.1} parent=1 // pred_fallthru
      _
    // Predicated region
    $region14: #{tpu_custom_call.1} parent=1 // pred_check
      _
    $region15: #{tpu_custom_call.1} parent=1 // pred_check_branch
      %76 = sbr.rel (0) target = $region17
    $region16: #{tpu_custom_call.1} parent=1 // pred_region
      %77 = dma.done [#allocation4], 256
    $region17: #{tpu_custom_call.1} parent=1 // pred_fallthru
      _
    %78 = vsyncpa [#allocation3], 1
    %79 = vsyncpa [#allocation4], 1

</llo_original>
